<compile_context>
chip_gen: v5e
topology: v5e:2x2
jax: 0.10.0
libtpu: 0.0.40
codegen_flags: <defaults>
</compile_context>

<pallas_src>
import numpy as np
import jax
import jax.numpy as jnp
from jax.experimental import pallas as pl
from jax.experimental.pallas import tpu as pltpu

LS = 64          # hidden size, matches `ls = 64` in the PyTorch module
OUT_W = 8        # lane-padded output slab width (col 0 = log_prob, col 1 = value)


def _round_up(x, m):
    return ((x + m - 1) // m) * m


# --------------------------------------------------------------------------
# kernel: one batch tile, fused actor+critic MLP + diag-covariance MVN log_prob
# --------------------------------------------------------------------------
def _fused_eval_kernel(state_ref, action_ref,
                       w1_ref, b1_ref, w2_ref, b2_ref, w3_ref, b3_ref,
                       nhiv_ref, lpc_ref, out_ref):
    wdt = w1_ref.dtype                            # f32 (default) or bf16 (opt-in)
    x = state_ref[...]                            # (TB, SP) f32
    a = action_ref[...]                           # (TB, A)  f32
    adim = a.shape[-1]                            # static

    # layer 1: [actor | critic] packed side by side -> (TB, 128), one MXU push
    h = jnp.tanh(jnp.dot(x.astype(wdt), w1_ref[...],
                         preferred_element_type=jnp.float32) + b1_ref[...])
    # layer 2: block-diag(aw2, cw2) -> (TB, 128)
    h = jnp.tanh(jnp.dot(h.astype(wdt), w2_ref[...],
                         preferred_element_type=jnp.float32) + b2_ref[...])
    # layer 3: block-diag(aw3, cw3) -> (TB, A+1); actor half gets tanh,
    # critic half (value head) stays linear.
    z = jnp.dot(h.astype(wdt), w3_ref[...],
                preferred_element_type=jnp.float32) + b3_ref[...]
    action_mean = jnp.tanh(z[:, :adim])           # (TB, A)
    value = z[:, adim:adim + 1]                   # (TB, 1)

    # diag-covariance MVN log_prob; -0.5/var and the logdet + A*log(2pi)
    # constant are precomputed in the wrapper (constant comes in via SMEM).
    diff = a - action_mean
    quad = jnp.sum(diff * diff * nhiv_ref[...], axis=-1, keepdims=True)  # (TB,1)
    logp = lpc_ref[0, 0] + quad                    # scalar + (TB,1)

    # two narrow stores; cols 2..7 are padding and never read by the wrapper
    out_ref[:, 0:1] = logp
    out_ref[:, 1:2] = value


# --------------------------------------------------------------------------
# one-time weight packing (actor + critic fused into 128-wide matmuls)
# --------------------------------------------------------------------------
def pack_params(params, state_dim, action_dim, dtype=jnp.float32):
    """Pack actor+critic weights. dtype=jnp.bfloat16 enables bf16 MXU inputs
    (biases / elementwise math stay f32)."""
    H = 2 * LS
    SP = _round_up(state_dim, 8)                  # pad K dim of layer-1 to 8
    w1 = jnp.zeros((SP, H), jnp.float32)
    w1 = (w1.at[:state_dim, :LS].set(params["aw1"])
            .at[:state_dim, LS:].set(params["cw1"]))
    b1 = jnp.concatenate([params["ab1"], params["cb1"]], axis=1)      # (1, 128)
    w2 = jnp.zeros((H, H), jnp.float32)
    w2 = w2.at[:LS, :LS].set(params["aw2"]).at[LS:, LS:].set(params["cw2"])
    b2 = jnp.concatenate([params["ab2"], params["cb2"]], axis=1)      # (1, 128)
    w3 = jnp.zeros((H, action_dim + 1), jnp.float32)
    w3 = (w3.at[:LS, :action_dim].set(params["aw3"])
            .at[LS:, action_dim:].set(params["cw3"]))
    b3 = jnp.concatenate([params["ab3"], params["cb3"]], axis=1)      # (1, A+1)
    return dict(w1=w1.astype(dtype), b1=b1, w2=w2.astype(dtype), b2=b2,
                w3=w3.astype(dtype), b3=b3)


# --------------------------------------------------------------------------
# wrapper
# --------------------------------------------------------------------------
def gauss_actor_critic_evaluate(state, action, packed, action_var, *, tile_b=2048):
    """Pallas equivalent of GaussActorCritic.evaluate(state, action), isDecay=True.

    Returns (action_logprob (B,), state_val (B,1), distr_entropy (B,)).
    action_var must be strictly positive.
    """
    B, S = state.shape
    A = action.shape[1]
    H = 2 * LS
    SP = packed["w1"].shape[0]                    # padded state feature dim

    # avoid extra un-hidden HBM copy ops when inputs are already f32
    if state.dtype != jnp.float32:
        state = state.astype(jnp.float32)
    if action.dtype != jnp.float32:
        action = action.astype(jnp.float32)
    if S != SP:                                   # pad K dim to match packed W1
        state = jnp.pad(state, ((0, 0), (0, SP - S)))

    # batch tile: multiple of 8, capped by tile_b, and clamped so there are
    # at least 2 grid tiles whenever B > 8 (keeps both v7x TCs busy).
    TB_cap = max(8, _round_up(int(tile_b), 8))
    TB = min(TB_cap, max(8, _round_up(-(-B // 2), 8)))
    n_tiles = pl.cdiv(B, TB)                      # ragged tail handled by Pallas

    # batch-independent constants hoisted out of the kernel
    var = action_var.reshape(1, A).astype(jnp.float32)
    neg_half_inv_var = (-0.5 / var)                                   # (1, A)
    log2pi = float(np.log(2.0 * np.pi))
    logdet = jnp.sum(jnp.log(var))
    logp_const = (-0.5 * (logdet + A * log2pi)).astype(jnp.float32).reshape(1, 1)
    ent_const = (0.5 * A * (1.0 + log2pi) + 0.5 * logdet).astype(jnp.float32)

    batch_spec = lambda w: pl.BlockSpec((TB, w), lambda i: (i, 0))
    const_spec = lambda shape: pl.BlockSpec(shape, lambda i: (0, 0))  # VMEM-resident

    out = pl.pallas_call(
        _fused_eval_kernel,
        out_shape=jax.ShapeDtypeStruct((B, OUT_W), jnp.float32),
        grid=(n_tiles,),
        in_specs=[
            batch_spec(SP),              # state   (tiled over batch)
            batch_spec(A),               # action  (tiled over batch)
            const_spec((SP, H)),         # packed W1
            const_spec((1, H)),          # packed b1
            const_spec((H, H)),          # packed W2 (block-diag)
            const_spec((1, H)),          # packed b2
            const_spec((H, A + 1)),      # packed W3 (block-diag)
            const_spec((1, A + 1)),      # packed b3
            const_spec((1, A)),          # -0.5 / var
            pl.BlockSpec(memory_space=pltpu.MemorySpace.SMEM),  # log_prob const
        ],
        out_specs=pl.BlockSpec((TB, OUT_W), lambda i: (i, 0)),
        compiler_params=pltpu.CompilerParams(
            dimension_semantics=("parallel",),    # shard batch tiles (v7x 2 TCs)
            vmem_limit_bytes=32 * 1024 * 1024),
    )(state, action, packed["w1"], packed["b1"], packed["w2"], packed["b2"],
      packed["w3"], packed["b3"], neg_half_inv_var, logp_const)

    logp = out[:, 0]
    value = out[:, 1:2]
    entropy = jnp.broadcast_to(ent_const, (B,))   # batch-independent constant
    return logp, value, entropy


# --------------------------------------------------------------------------
# init + pure-JAX reference (un-packed weights)
# --------------------------------------------------------------------------
def init_params(key, state_dim, action_dim):
    """Deterministic synthetic init mimicking nn.Linear default ranges.
    Weights stored as (in, out) for x @ W + b."""
    def linear(key, fan_in, fan_out):
        kw, kb = jax.random.split(key)
        bound = 1.0 / np.sqrt(fan_in)
        w = jax.random.uniform(kw, (fan_in, fan_out), jnp.float32, -bound, bound)
        b = jax.random.uniform(kb, (1, fan_out), jnp.float32, -bound, bound)
        return w, b

    keys = jax.random.split(key, 6)
    aw1, ab1 = linear(keys[0], state_dim, LS)
    aw2, ab2 = linear(keys[1], LS, LS)
    aw3, ab3 = linear(keys[2], LS, action_dim)
    cw1, cb1 = linear(keys[3], state_dim, LS)
    cw2, cb2 = linear(keys[4], LS, LS)
    cw3, cb3 = linear(keys[5], LS, 1)
    return dict(aw1=aw1, ab1=ab1, aw2=aw2, ab2=ab2, aw3=aw3, ab3=ab3,
                cw1=cw1, cb1=cb1, cw2=cw2, cb2=cb2, cw3=cw3, cb3=cb3)


def reference_evaluate(state, action, params, action_var):
    """Pure-JAX reference for correctness checking."""
    h = jnp.tanh(state @ params["aw1"] + params["ab1"])
    h = jnp.tanh(h @ params["aw2"] + params["ab2"])
    mean = jnp.tanh(h @ params["aw3"] + params["ab3"])
    var = action_var.reshape(1, -1)
    A = mean.shape[-1]
    log2pi = np.log(2.0 * np.pi)
    diff = action - mean
    logp = -0.5 * (jnp.sum(diff * diff / var, axis=-1)
                   + jnp.sum(jnp.log(var)) + A * log2pi)
    ent = jnp.full((state.shape[0],),
                   0.5 * A * (1.0 + log2pi) + 0.5 * jnp.sum(jnp.log(var)))
    hc = jnp.tanh(state @ params["cw1"] + params["cb1"])
    hc = jnp.tanh(hc @ params["cw2"] + params["cb2"])
    val = hc @ params["cw3"] + params["cb3"]
    return logp, val, ent


if __name__ == "__main__":
    # cartpole-swingup-ish sizes: state_dim=5, action_dim=1
    STATE_DIM, ACTION_DIM = 5, 1
    ACTION_STD_INIT = 0.6

    key = jax.random.PRNGKey(0)
    k_params, k_state, k_action = jax.random.split(key, 3)

    params = init_params(k_params, STATE_DIM, ACTION_DIM)
    packed = pack_params(params, STATE_DIM, ACTION_DIM)            # f32 (default)
    action_var = jnp.full((ACTION_DIM,), ACTION_STD_INIT * ACTION_STD_INIT,
                          dtype=jnp.float32)

    # --- primary check: small batch, single tile ---
    B = 8
    state = jax.random.normal(k_state, (B, STATE_DIM), jnp.float32)
    action = jax.random.normal(k_action, (B, ACTION_DIM), jnp.float32)

    logp, val, ent = gauss_actor_critic_evaluate(state, action, packed, action_var)
    jax.block_until_ready((logp, val, ent))

    r_logp, r_val, r_ent = reference_evaluate(state, action, params, action_var)
    np.testing.assert_allclose(np.asarray(logp), np.asarray(r_logp), rtol=1e-5, atol=1e-5)
    np.testing.assert_allclose(np.asarray(val), np.asarray(r_val), rtol=1e-5, atol=1e-5)
    np.testing.assert_allclose(np.asarray(ent), np.asarray(r_ent), rtol=1e-5, atol=1e-5)

    # --- secondary check: multi-tile ragged grid (300 = 2*128 + 44 tail) ---
    B2 = 300
    k_s2, k_a2 = jax.random.split(jax.random.PRNGKey(1))
    state2 = jax.random.normal(k_s2, (B2, STATE_DIM), jnp.float32)
    action2 = jax.random.normal(k_a2, (B2, ACTION_DIM), jnp.float32)

    logp2, val2, ent2 = gauss_actor_critic_evaluate(state2, action2, packed,
                                                    action_var, tile_b=128)
    jax.block_until_ready((logp2, val2, ent2))

    r_logp2, r_val2, r_ent2 = reference_evaluate(state2, action2, params, action_var)
    np.testing.assert_allclose(np.asarray(logp2), np.asarray(r_logp2), rtol=1e-5, atol=1e-5)
    np.testing.assert_allclose(np.asarray(val2), np.asarray(r_val2), rtol=1e-5, atol=1e-5)
    np.testing.assert_allclose(np.asarray(ent2), np.asarray(r_ent2), rtol=1e-5, atol=1e-5)

    # --- opt-in bf16-MXU path (numerically looser; elementwise math stays f32) ---
    packed_bf16 = pack_params(params, STATE_DIM, ACTION_DIM, dtype=jnp.bfloat16)
    logp3, val3, ent3 = gauss_actor_critic_evaluate(state2, action2, packed_bf16,
                                                    action_var, tile_b=128)
    jax.block_until_ready((logp3, val3, ent3))
    assert np.all(np.isfinite(np.asarray(logp3))) and np.all(np.isfinite(np.asarray(val3)))
    np.testing.assert_allclose(np.asarray(val3), np.asarray(r_val2), rtol=0.0, atol=0.1)
    np.testing.assert_allclose(np.asarray(logp3), np.asarray(r_logp2), rtol=0.0, atol=0.3)

    # TODO(synk): act()/get_action_and_value() use distr.sample() (stochastic) and
    # the isDecay=False Normal/logstd path; only the deterministic evaluate()
    # path is implemented (pltpu.prng_* could provide sampling if needed).
    print("KERNEL_OK")
</pallas_src>

<mosaic_0001>
module attributes {stable_mosaic.version = 11 : i64} {
  func.func @_fused_eval_kernel(%arg0: i32, %arg1: memref<8x8xf32, #tpu.memory_space<vmem>>, %arg2: memref<8x1xf32, #tpu.memory_space<vmem>>, %arg3: memref<8x128xf32, #tpu.memory_space<vmem>>, %arg4: memref<1x128xf32, #tpu.memory_space<vmem>>, %arg5: memref<128x128xf32, #tpu.memory_space<vmem>>, %arg6: memref<1x128xf32, #tpu.memory_space<vmem>>, %arg7: memref<128x2xf32, #tpu.memory_space<vmem>>, %arg8: memref<1x2xf32, #tpu.memory_space<vmem>>, %arg9: memref<1x1xf32, #tpu.memory_space<vmem>>, %arg10: memref<1x1xf32, #tpu.memory_space<smem>>, %arg11: memref<8x8xf32, #tpu.memory_space<vmem>>) attributes {dimension_semantics = [#tpu.dimension_semantics<parallel>], iteration_bounds = array<i64: 1>, scalar_prefetch = 0 : i64, scratch_operands = 0 : i64, tpu.core_type = #tpu.core_type<tc>, window_params = [{transform_indices = @transform_0, window_bounds = array<i64: 8, 8>}, {transform_indices = @transform_1, window_bounds = array<i64: 8, 1>}, {pipeline_mode = #tpu.pipeline_mode<synchronous>, transform_indices = @transform_2, window_bounds = array<i64: 8, 128>}, {pipeline_mode = #tpu.pipeline_mode<synchronous>, transform_indices = @transform_3, window_bounds = array<i64: 1, 128>}, {pipeline_mode = #tpu.pipeline_mode<synchronous>, transform_indices = @transform_4, window_bounds = array<i64: 128, 128>}, {pipeline_mode = #tpu.pipeline_mode<synchronous>, transform_indices = @transform_5, window_bounds = array<i64: 1, 128>}, {pipeline_mode = #tpu.pipeline_mode<synchronous>, transform_indices = @transform_6, window_bounds = array<i64: 128, 2>}, {pipeline_mode = #tpu.pipeline_mode<synchronous>, transform_indices = @transform_7, window_bounds = array<i64: 1, 2>}, {pipeline_mode = #tpu.pipeline_mode<synchronous>, transform_indices = @transform_8, window_bounds = array<i64: 1, 1>}, {transform_indices = @transform_9, window_bounds = array<i64: 1, 1>}, {transform_indices = @transform_10, window_bounds = array<i64: 8, 8>}]} {
    %c0 = arith.constant 0 : index
    %c0_0 = arith.constant 0 : index
    %0 = vector.load %arg1[%c0, %c0_0] : memref<8x8xf32, #tpu.memory_space<vmem>>, vector<8x8xf32>
    %c0_1 = arith.constant 0 : index
    %c0_2 = arith.constant 0 : index
    %1 = vector.load %arg2[%c0_1, %c0_2] : memref<8x1xf32, #tpu.memory_space<vmem>>, vector<8x1xf32>
    %c0_3 = arith.constant 0 : index
    %c0_4 = arith.constant 0 : index
    %2 = vector.load %arg3[%c0_3, %c0_4] : memref<8x128xf32, #tpu.memory_space<vmem>>, vector<8x128xf32>
    %cst = arith.constant dense<0.000000e+00> : vector<8x128xf32>
    %3 = tpu.matmul %0, %2, %cst {dimension_numbers = #tpu.dot_dimension_numbers<[1], [0], [0], [1], [0, 0, 1, 1], [], []>} : vector<8x8xf32>, vector<8x128xf32>, vector<8x128xf32> -> vector<8x128xf32>
    %c0_5 = arith.constant 0 : index
    %c0_6 = arith.constant 0 : index
    %4 = vector.load %arg4[%c0_5, %c0_6] : memref<1x128xf32, #tpu.memory_space<vmem>>, vector<1x128xf32>
    %5 = vector.broadcast %4 : vector<1x128xf32> to vector<8x128xf32>
    %6 = arith.addf %3, %5 : vector<8x128xf32>
    %7 = math.tanh %6 : vector<8x128xf32>
    %c0_7 = arith.constant 0 : index
    %c0_8 = arith.constant 0 : index
    %8 = vector.load %arg5[%c0_7, %c0_8] : memref<128x128xf32, #tpu.memory_space<vmem>>, vector<128x128xf32>
    %cst_9 = arith.constant dense<0.000000e+00> : vector<8x128xf32>
    %9 = tpu.matmul %7, %8, %cst_9 {dimension_numbers = #tpu.dot_dimension_numbers<[1], [0], [0], [1], [0, 0, 1, 1], [], []>} : vector<8x128xf32>, vector<128x128xf32>, vector<8x128xf32> -> vector<8x128xf32>
    %c0_10 = arith.constant 0 : index
    %c0_11 = arith.constant 0 : index
    %10 = vector.load %arg6[%c0_10, %c0_11] : memref<1x128xf32, #tpu.memory_space<vmem>>, vector<1x128xf32>
    %11 = vector.broadcast %10 : vector<1x128xf32> to vector<8x128xf32>
    %12 = arith.addf %9, %11 : vector<8x128xf32>
    %13 = math.tanh %12 : vector<8x128xf32>
    %c0_12 = arith.constant 0 : index
    %c0_13 = arith.constant 0 : index
    %14 = vector.load %arg7[%c0_12, %c0_13] : memref<128x2xf32, #tpu.memory_space<vmem>>, vector<128x2xf32>
    %cst_14 = arith.constant dense<0.000000e+00> : vector<8x2xf32>
    %15 = tpu.matmul %13, %14, %cst_14 {dimension_numbers = #tpu.dot_dimension_numbers<[1], [0], [0], [1], [0, 0, 1, 1], [], []>} : vector<8x128xf32>, vector<128x2xf32>, vector<8x2xf32> -> vector<8x2xf32>
    %c0_15 = arith.constant 0 : index
    %c0_16 = arith.constant 0 : index
    %16 = vector.load %arg8[%c0_15, %c0_16] : memref<1x2xf32, #tpu.memory_space<vmem>>, vector<1x2xf32>
    %17 = vector.broadcast %16 : vector<1x2xf32> to vector<8x2xf32>
    %18 = arith.addf %15, %17 : vector<8x2xf32>
    %19 = vector.extract_strided_slice %18 {offsets = [0, 0], sizes = [8, 1], strides = [1, 1]} : vector<8x2xf32> to vector<8x1xf32>
    %20 = math.tanh %19 : vector<8x1xf32>
    %21 = vector.extract_strided_slice %18 {offsets = [0, 1], sizes = [8, 1], strides = [1, 1]} : vector<8x2xf32> to vector<8x1xf32>
    %22 = arith.subf %1, %20 : vector<8x1xf32>
    %23 = arith.mulf %22, %22 : vector<8x1xf32>
    %c0_17 = arith.constant 0 : index
    %c0_18 = arith.constant 0 : index
    %24 = vector.load %arg9[%c0_17, %c0_18] : memref<1x1xf32, #tpu.memory_space<vmem>>, vector<1x1xf32>
    %25 = vector.broadcast %24 : vector<1x1xf32> to vector<8x1xf32>
    %26 = arith.mulf %23, %25 : vector<8x1xf32>
    %cst_19 = arith.constant dense<0.000000e+00> : vector<8xf32>
    %27 = vector.multi_reduction <add>, %26, %cst_19 [1] : vector<8x1xf32> to vector<8xf32>
    %28 = vector.shape_cast %27 : vector<8xf32> to vector<8x1xf32>
    %c0_20 = arith.constant 0 : index
    %c0_21 = arith.constant 0 : index
    %29 = memref.load %arg10[%c0_20, %c0_21] : memref<1x1xf32, #tpu.memory_space<smem>>
    %30 = vector.broadcast %29 : f32 to vector<8x1xf32>
    %31 = arith.addf %30, %28 : vector<8x1xf32>
    %c0_22 = arith.constant 0 : index
    %c0_23 = arith.constant 0 : index
    %32 = vector.load %arg11[%c0_22, %c0_23] : memref<8x8xf32, #tpu.memory_space<vmem>>, vector<8x1xf32>
    tpu.vector_store %arg11[%c0_22, %c0_23], %31 {strides = array<i32>} : memref<8x8xf32, #tpu.memory_space<vmem>>, vector<8x1xf32>,
    %c0_24 = arith.constant 0 : index
    %c1 = arith.constant 1 : index
    %33 = vector.load %arg11[%c0_24, %c1] : memref<8x8xf32, #tpu.memory_space<vmem>>, vector<8x1xf32>
    tpu.vector_store %arg11[%c0_24, %c1], %21 {strides = array<i32>} : memref<8x8xf32, #tpu.memory_space<vmem>>, vector<8x1xf32>,
    return
  }
  func.func @transform_0(%arg0: i32) -> (i32, i32) {
    %c0_i32 = arith.constant 0 : i32
    %c0_i32_0 = arith.constant 0 : i32
    return %arg0, %c0_i32 : i32, i32
  }
  func.func @transform_1(%arg0: i32) -> (i32, i32) {
    %c0_i32 = arith.constant 0 : i32
    %c0_i32_0 = arith.constant 0 : i32
    return %arg0, %c0_i32 : i32, i32
  }
  func.func @transform_2(%arg0: i32) -> (i32, i32) {
    %c0_i32 = arith.constant 0 : i32
    %c0_i32_0 = arith.constant 0 : i32
    %c0_i32_1 = arith.constant 0 : i32
    return %c0_i32, %c0_i32_0 : i32, i32
  }
  func.func @transform_3(%arg0: i32) -> (i32, i32) {
    %c0_i32 = arith.constant 0 : i32
    %c0_i32_0 = arith.constant 0 : i32
    %c0_i32_1 = arith.constant 0 : i32
    return %c0_i32, %c0_i32_0 : i32, i32
  }
  func.func @transform_4(%arg0: i32) -> (i32, i32) {
    %c0_i32 = arith.constant 0 : i32
    %c0_i32_0 = arith.constant 0 : i32
    %c0_i32_1 = arith.constant 0 : i32
    return %c0_i32, %c0_i32_0 : i32, i32
  }
  func.func @transform_5(%arg0: i32) -> (i32, i32) {
    %c0_i32 = arith.constant 0 : i32
    %c0_i32_0 = arith.constant 0 : i32
    %c0_i32_1 = arith.constant 0 : i32
    return %c0_i32, %c0_i32_0 : i32, i32
  }
  func.func @transform_6(%arg0: i32) -> (i32, i32) {
    %c0_i32 = arith.constant 0 : i32
    %c0_i32_0 = arith.constant 0 : i32
    %c0_i32_1 = arith.constant 0 : i32
    return %c0_i32, %c0_i32_0 : i32, i32
  }
  func.func @transform_7(%arg0: i32) -> (i32, i32) {
    %c0_i32 = arith.constant 0 : i32
    %c0_i32_0 = arith.constant 0 : i32
    %c0_i32_1 = arith.constant 0 : i32
    return %c0_i32, %c0_i32_0 : i32, i32
  }
  func.func @transform_8(%arg0: i32) -> (i32, i32) {
    %c0_i32 = arith.constant 0 : i32
    %c0_i32_0 = arith.constant 0 : i32
    %c0_i32_1 = arith.constant 0 : i32
    return %c0_i32, %c0_i32_0 : i32, i32
  }
  func.func @transform_9(%arg0: i32) -> (i32, i32) {
    %c0_i32 = arith.constant 0 : i32
    %c0_i32_0 = arith.constant 0 : i32
    %c0_i32_1 = arith.constant 0 : i32
    return %c0_i32, %c0_i32_0 : i32, i32
  }
  func.func @transform_10(%arg0: i32) -> (i32, i32) {
    %c0_i32 = arith.constant 0 : i32
    %c0_i32_0 = arith.constant 0 : i32
    return %arg0, %c0_i32 : i32, i32
  }
}

</mosaic_0001>

<llo_original>
// kernel: tpu_custom_call.1
$region0: #{tpu_custom_call.1}
  #allocation0 [shape = 'u32[]', space=smem, size = 0x4, offset = 0x4, fixed_abs, tag = 'smem constant byte address 0x4 - core index']
  #allocation1 [shape = 'u32[72,128]{1,0:T(1,128)}', space=vmem, size = 0x9000, scoped, tag = 'internal scratch']
  #allocation2 [shape = 'f32[1,1]{1,0:T(1,128)S(1)}', space=vmem, size = 0x200, scoped, tag = 'scoped memory for tpu_custom_call.1']
  #allocation3 [shape = 'f32[1,1]{1,0:T(1,128)S(6)}', space=smem, size = 0x200, scoped, tag = 'scoped memory for tpu_custom_call.1']
  %s0 = inlined_call_operand.vmem [shape: f32[8,8], index: 0, kind: input, shape index: {}]
  %s1 = inlined_call_operand.vmem [shape: f32[8,1], index: 1, kind: input, shape index: {}]
  %s2 = inlined_call_operand.hbm [shape: f32[8,128], index: 2, kind: input, shape index: {}]
  %s3 = inlined_call_operand.vmem [shape: f32[1,128], index: 3, kind: input, shape index: {}]
  %s4 = inlined_call_operand.vmem [shape: f32[128,128], index: 4, kind: input, shape index: {}]
  %s5 = inlined_call_operand.vmem [shape: f32[1,128], index: 5, kind: input, shape index: {}]
  %s6 = inlined_call_operand.vmem [shape: f32[128,2], index: 6, kind: input, shape index: {}]
  %s7 = inlined_call_operand.vmem [shape: f32[1,2], index: 7, kind: input, shape index: {}]
  %s8 = inlined_call_operand.<no memory space> [shape: f32[1,1], index: 8, kind: input, shape index: {}]
  %s9 = inlined_call_operand.<no memory space> [shape: f32[1,1], index: 9, kind: input, shape index: {}]
  %s10 = inlined_call_operand.hbm [shape: f32[8,8], index: 10, kind: output, shape index: {}]
  %s11 = sld [smem:[#allocation0]]
  $region54: #{tpu_custom_call.1} parent=0
    _
  %s13 = ssub.s32 1, %s11
  %s14 = scalar_select 0, %s13, %s11
  %v15 = vstv %s8
  %16 = vst [vmem:[#allocation2] sm:$0x1] %v15
  %17 = sst [smem:[#allocation3]] %s9
  $region1: #{tpu_custom_call.1} parent=0
    #allocation4 [shape = 'u8[4096]{0}', space=vmem, size = 0x1000, scoped, tag = 'input window, operand 2, single buffered']
    #allocation5 [shape = 's32[1]{0}', space=sflag, size = 0x4, scoped, tag = 'scoped memory for tpu_custom_call.1']
    #allocation6 [shape = 's32[1]{0}', space=sflag, size = 0x4, scoped, tag = 'scoped memory for tpu_custom_call.1']
    #allocation7 [shape = 'u8[4096]{0}', space=vmem, size = 0x1000, scoped, tag = 'output window, operand 0, single buffered']
    %18 = vsyncpa [#allocation5], 0
    %19 = vsyncpa [#allocation6], 0
    // Predicated region
    $region2: #{tpu_custom_call.1} parent=1 // pred_check
      _
    $region3: #{tpu_custom_call.1} parent=1 // pred_check_branch
      %21 = sbr.rel (0) target = $region5
    $region4: #{tpu_custom_call.1} parent=1 // pred_region
      _
    $region5: #{tpu_custom_call.1} parent=1 // pred_fallthru
      _
    // Predicated region
    $region6: #{tpu_custom_call.1} parent=1 // pred_check
      _
    $region7: #{tpu_custom_call.1} parent=1 // pred_check_branch
      %23 = sbr.rel (0) target = $region9
    $region8: #{tpu_custom_call.1} parent=1 // pred_region
      _
    $region9: #{tpu_custom_call.1} parent=1 // pred_fallthru
      _
    // Predicated region
    $region10: #{tpu_custom_call.1} parent=1 // pred_check
      _
    $region11: #{tpu_custom_call.1} parent=1 // pred_check_branch
      %25 = sbr.rel (0) target = $region13
    $region12: #{tpu_custom_call.1} parent=1 // pred_region
      %27 = vsyncadd [#allocation5], 0
      %s29 = sshll.u32 %s2, 4
      %s30 = int_to_ptr.hbm [resolvable:$true] %s29
      %s31 = sshll.u32 [#allocation4], 4
      %s32 = int_to_ptr.vmem [resolvable:$true] %s31
      %34 = dma.hbm_to_vmem [thread:$0]  %s30, 128, %s32, [#allocation5]
    $region13: #{tpu_custom_call.1} parent=1 // pred_fallthru
      _
    // Predicated region
    $region14: #{tpu_custom_call.1} parent=1 // pred_check
      _
    $region15: #{tpu_custom_call.1} parent=1 // pred_check_branch
      %36 = sbr.rel (0) target = $region17
    $region16: #{tpu_custom_call.1} parent=1 // pred_region
      _
    $region17: #{tpu_custom_call.1} parent=1 // pred_fallthru
      _
    // Predicated region
    $region18: #{tpu_custom_call.1} parent=1 // pred_check
      _
    $region19: #{tpu_custom_call.1} parent=1 // pred_check_branch
      %38 = sbr.rel (0) target = $region21
    $region20: #{tpu_custom_call.1} parent=1 // pred_region
      _
    $region21: #{tpu_custom_call.1} parent=1 // pred_fallthru
      _
    // Predicated region
    $region22: #{tpu_custom_call.1} parent=1 // pred_check
      _
    $region23: #{tpu_custom_call.1} parent=1 // pred_check_branch
      %40 = sbr.rel (0) target = $region25
    $region24: #{tpu_custom_call.1} parent=1 // pred_region
      _
    $region25: #{tpu_custom_call.1} parent=1 // pred_fallthru
      _
    // Predicated region
    $region26: #{tpu_custom_call.1} parent=1 // pred_check
      _
    $region27: #{tpu_custom_call.1} parent=1 // pred_check_branch
      %42 = sbr.rel (0) target = $region29
    $region28: #{tpu_custom_call.1} parent=1 // pred_region
      _
    $region29: #{tpu_custom_call.1} parent=1 // pred_fallthru
      _
    // Predicated region
    $region30: #{tpu_custom_call.1} parent=1 // pred_check
      _
    $region31: #{tpu_custom_call.1} parent=1 // pred_check_branch
      %44 = sbr.rel (0) target = $region33
    $region32: #{tpu_custom_call.1} parent=1 // pred_region
      _
    $region33: #{tpu_custom_call.1} parent=1 // pred_fallthru
      _
    // Predicated region
    $region34: #{tpu_custom_call.1} parent=1 // pred_check
      _
    $region35: #{tpu_custom_call.1} parent=1 // pred_check_branch
      %46 = sbr.rel (0) target = $region37
    $region36: #{tpu_custom_call.1} parent=1 // pred_region
      _
    $region37: #{tpu_custom_call.1} parent=1 // pred_fallthru
      _
    // Predicated region
    $region38: #{tpu_custom_call.1} parent=1 // pred_check
      _
    $region39: #{tpu_custom_call.1} parent=1 // pred_check_branch
      %48 = sbr.rel (0) target = $region41
    $region40: #{tpu_custom_call.1} parent=1 // pred_region
      _
    $region41: #{tpu_custom_call.1} parent=1 // pred_fallthru
      _
    // Predicated region
    $region42: #{tpu_custom_call.1} parent=1 // pred_check
      _
    $region43: #{tpu_custom_call.1} parent=1 // pred_check_branch
      %50 = sbr.rel (0) target = $region45
    $region44: #{tpu_custom_call.1} parent=1 // pred_region
      %52 = dma.done [#allocation5], 128
    $region45: #{tpu_custom_call.1} parent=1 // pred_fallthru
      _
    %v53 = vld [vmem:[%s0] sm:$0xff]
    %v54 = vld [vmem:[%s1] sm:$0xff]
    %v55 = vld [vmem:[#allocation4] sm:$0xff]
    %v56 = vld [vmem:[%s3] sm:$0x1]
    %v58 = vperm.slane %v56, 0
    %vm60 = vcmask 64512
    %v62 = vsel %vm60, %v53, 0
    %64 = vmatpush.msra.mxu0 0.0
    %65 = vmatpush.msra.mxu0 0.0
    %66 = vmatpush.msra.mxu0 0.0
    %67 = vmatpush.msra.mxu0 0.0
    %68 = vmatpush.msra.mxu0 0.0
    %69 = vmatpush.msra.mxu0 0.0
    %70 = vmatpush.msra.mxu0 0.0
    %71 = vmatpush.msra.mxu0 0.0
    %72 = vmatpush.msra.mxu0 0.0
    %73 = vmatpush.msra.mxu0 0.0
    %74 = vmatpush.msra.mxu0 0.0
    %75 = vmatpush.msra.mxu0 0.0
    %76 = vmatpush.msra.mxu0 0.0
    %77 = vmatpush.msra.mxu0 0.0
    %78 = vmatpush.msra.mxu0 0.0
    %79 = vmatpush.msra.mxu0 %v55
    %80 = vmatmul.f32.gmra.mxu0 %v62
    %v81 = vpop.f32.mrf.mxu0
    %v82 = vadd.f32 %v58, %v81
    %83 = vdwg.mxu0
    %v84 = vtanh.pop %v82
    %v85 = vld [vmem:[%s4] sm:$0xff]
    %v86 = vld [vmem:[%s4 + $0x8] sm:$0xff]
    %v87 = vld [vmem:[%s4 + $0x10] sm:$0xff]
    %v88 = vld [vmem:[%s4 + $0x18] sm:$0xff]
    %v89 = vld [vmem:[%s4 + $0x20] sm:$0xff]
    %v90 = vld [vmem:[%s4 + $0x28] sm:$0xff]
    %v91 = vld [vmem:[%s4 + $0x30] sm:$0xff]
    %v92 = vld [vmem:[%s4 + $0x38] sm:$0xff]
    %v93 = vld [vmem:[%s4 + $0x40] sm:$0xff]
    %v94 = vld [vmem:[%s4 + $0x48] sm:$0xff]
    %v95 = vld [vmem:[%s4 + $0x50] sm:$0xff]
    %v96 = vld [vmem:[%s4 + $0x58] sm:$0xff]
    %v97 = vld [vmem:[%s4 + $0x60] sm:$0xff]
    %v98 = vld [vmem:[%s4 + $0x68] sm:$0xff]
    %v99 = vld [vmem:[%s4 + $0x70] sm:$0xff]
    %v100 = vld [vmem:[%s4 + $0x78] sm:$0xff]
    %v101 = vld [vmem:[%s5] sm:$0x1]
    %v103 = vperm.slane %v101, 0
    %105 = vmatpush.msra.mxu0 %v100
    %106 = vmatpush.msra.mxu0 %v99
    %107 = vmatpush.msra.mxu0 %v98
    %108 = vmatpush.msra.mxu0 %v97
    %109 = vmatpush.msra.mxu0 %v96
    %110 = vmatpush.msra.mxu0 %v95
    %111 = vmatpush.msra.mxu0 %v94
    %112 = vmatpush.msra.mxu0 %v93
    %113 = vmatpush.msra.mxu0 %v92
    %114 = vmatpush.msra.mxu0 %v91
    %115 = vmatpush.msra.mxu0 %v90
    %116 = vmatpush.msra.mxu0 %v89
    %117 = vmatpush.msra.mxu0 %v88
    %118 = vmatpush.msra.mxu0 %v87
    %119 = vmatpush.msra.mxu0 %v86
    %120 = vmatpush.msra.mxu0 %v85
    %121 = vmatmul.f32.gmra.mxu0 %v84
    %v122 = vpop.f32.mrf.mxu0
    %v123 = vadd.f32 %v103, %v122
    %124 = vdwg.mxu0
    %v125 = vtanh.pop %v123
    %v126 = vld [vmem:[%s6] sm:$0xff]
    %v127 = vld [vmem:[%s6 + $0x8] sm:$0xff]
    %v128 = vld [vmem:[%s6 + $0x10] sm:$0xff]
    %v129 = vld [vmem:[%s6 + $0x18] sm:$0xff]
    %v130 = vld [vmem:[%s6 + $0x20] sm:$0xff]
    %v131 = vld [vmem:[%s6 + $0x28] sm:$0xff]
    %v132 = vld [vmem:[%s6 + $0x30] sm:$0xff]
    %v133 = vld [vmem:[%s6 + $0x38] sm:$0xff]
    %v134 = vld [vmem:[%s6 + $0x40] sm:$0xff]
    %v135 = vld [vmem:[%s6 + $0x48] sm:$0xff]
    %v136 = vld [vmem:[%s6 + $0x50] sm:$0xff]
    %v137 = vld [vmem:[%s6 + $0x58] sm:$0xff]
    %v138 = vld [vmem:[%s6 + $0x60] sm:$0xff]
    %v139 = vld [vmem:[%s6 + $0x68] sm:$0xff]
    %v140 = vld [vmem:[%s6 + $0x70] sm:$0xff]
    %v141 = vld [vmem:[%s6 + $0x78] sm:$0xff]
    %v142 = vld [vmem:[%s7] sm:$0x1]
    %v144 = vperm.slane %v142, 0
    %146 = vmatpush.msra.mxu0 %v141
    %147 = vmatpush.msra.mxu0 %v140
    %148 = vmatpush.msra.mxu0 %v139
    %149 = vmatpush.msra.mxu0 %v138
    %150 = vmatpush.msra.mxu0 %v137
    %151 = vmatpush.msra.mxu0 %v136
    %152 = vmatpush.msra.mxu0 %v135
    %153 = vmatpush.msra.mxu0 %v134
    %154 = vmatpush.msra.mxu0 %v133
    %155 = vmatpush.msra.mxu0 %v132
    %156 = vmatpush.msra.mxu0 %v131
    %157 = vmatpush.msra.mxu0 %v130
    %158 = vmatpush.msra.mxu0 %v129
    %159 = vmatpush.msra.mxu0 %v128
    %160 = vmatpush.msra.mxu0 %v127
    %161 = vmatpush.msra.mxu0 %v126
    %162 = vmatmul.f32.gmra.mxu0 %v125
    %v163 = vpop.f32.mrf.mxu0
    %v164 = vadd.f32 %v144, %v163
    %165 = vdwg.mxu0
    %v166 = vtanh.pop %v164
    %v167 = vsub.f32 %v54, %v166
    %v168 = vmul.f32 %v167, %v167
    %v169 = vld [vmem:[#allocation2] sm:$0x1]
    %v171 = vperm.slane %v169, 0
    %v173 = vmul.f32 %v168, %v171
    %v174 = vadd.f32 %v173, 0.0
    %s175 = sld [smem:[#allocation3]]
    %v176 = vstv %s175
    %v177 = vadd.f32 %v176, %v174
    %vm178 = vcmask 7168
    %179 = vst.msk [vmem:[#allocation7] sm:$0xff] %vm178, %v177
    %vm180 = vcmask 15368
    %181 = vst.msk [vmem:[#allocation7] sm:$0xff] %vm180, %v164
    // Predicated region
    $region46: #{tpu_custom_call.1} parent=1 // pred_check
      _
    $region47: #{tpu_custom_call.1} parent=1 // pred_check_branch
      %183 = sbr.rel (0) target = $region49
    $region48: #{tpu_custom_call.1} parent=1 // pred_region
      %185 = vsyncadd [#allocation6], 0
      %s187 = sshll.u32 [#allocation7], 4
      %s188 = int_to_ptr.vmem [resolvable:$true] %s187
      %s189 = sshll.u32 %s10, 4
      %s190 = int_to_ptr.hbm [resolvable:$true] %s189
      %192 = dma.vmem_to_hbm [thread:$0]  %s188, 128, %s190, [#allocation6]
    $region49: #{tpu_custom_call.1} parent=1 // pred_fallthru
      _
    // Predicated region
    $region50: #{tpu_custom_call.1} parent=1 // pred_check
      _
    $region51: #{tpu_custom_call.1} parent=1 // pred_check_branch
      %194 = sbr.rel (0) target = $region53
    $region52: #{tpu_custom_call.1} parent=1 // pred_region
      %196 = dma.done [#allocation6], 128
    $region53: #{tpu_custom_call.1} parent=1 // pred_fallthru
      _
    %197 = vsyncpa [#allocation5], 1
    %198 = vsyncpa [#allocation6], 1

</llo_original>
